<compile_context>
chip_gen: v6e
topology: v6e:2x2x1
jax: 0.10.0
libtpu: 0.0.40
codegen_flags: <defaults>
</compile_context>

<pallas_src>
import jax
import jax.numpy as jnp
from jax.experimental import pallas as pl
from jax.experimental.pallas import tpu as pltpu


def _round_up(n: int, m: int) -> int:
    return ((n + m - 1) // m) * m


def ncv_ode_kernel(x_ref, ssum_ref,
                   w0_ref, b0_ref, w1_ref, b1_ref, w1t_ref,
                   w2_ref, w0sum_ref,
                   c_ref, b2_ref,
                   out_ref):
    # Feature-major tiles: features on sublanes, batch on the 128-lane axis.
    x = x_ref[...]              # (D_in, TB)
    score_sum = ssum_ref[...]   # (1,    TB)  precomputed sum over score features (f32)
    w0 = w0_ref[...]            # (H1, D_in)  PyTorch (out, in) orientation
    b0 = b0_ref[...]            # (H1, 1)
    w1 = w1_ref[...]            # (H2, H1)
    b1 = b1_ref[...]            # (H2, 1)
    w1t = w1t_ref[...]          # (H1, H2)    precomputed transpose (no in-kernel XLU transpose)
    w2 = w2_ref[...]            # (H2, 1)     W2^T as a column
    w0s = w0sum_ref[...]        # (H1, 1)     sum_d W0[h, d]  (fuses away the gx matmul)
    c = c_ref[0, 0]             # scalar from SMEM (f32)
    b2 = b2_ref[0, 0]           # scalar from SMEM (f32)

    cd = x.dtype  # elementwise compute dtype (f32 by default; bf16 opt-in on v6e/v7x)

    # ---- forward MLP: sigmoid(L0) -> sigmoid(L1) -> L2 (linear) ----
    # sigmoid(z) = 0.5 * (1 + tanh(0.5*z)): a single EUP transcendental per activation.
    z0 = jnp.dot(w0, x, preferred_element_type=jnp.float32).astype(cd) + b0   # (H1, TB)
    h0 = 0.5 * (jnp.tanh(0.5 * z0) + 1.0)
    z1 = jnp.dot(w1, h0, preferred_element_type=jnp.float32).astype(cd) + b1  # (H2, TB)
    h1 = 0.5 * (jnp.tanh(0.5 * z1) + 1.0)

    # y = W2 @ h1 + b2 as VPU multiply + sublane reduce (avoids an N=1 MXU matmul);
    # t = W2 * h1 is reused below for the gradient factor.
    t = w2 * h1                                                          # (H2, TB)
    y = jnp.sum(t.astype(jnp.float32), axis=0, keepdims=True) + b2       # (1, TB)

    # ---- analytic dy/dx for the scalar-output MLP, with fused gradient sum ----
    g1 = t * (1.0 - h1)                                                  # (H2, TB)
    g0 = (jnp.dot(w1t, g1, preferred_element_type=jnp.float32).astype(cd)
          * (h0 * (1.0 - h0)))                                           # (H1, TB)
    # grads.sum() = sum_d (W0^T @ g0)[d, b] = sum_h (sum_d W0[h, d]) g0[h, b]
    grads_sum = jnp.sum((w0s * g0).astype(jnp.float32),
                        axis=0, keepdims=True)                           # (1, TB)

    # y_pred = c + grads.sum() + eva_net * score.sum()
    out_ref[...] = (c + grads_sum + y * score_sum).astype(out_ref.dtype)


def ncv_ode_forward(x, scores, params, *, block_b=8192, acts_dtype=jnp.float32):
    """x: (B, D_in), scores: (B, S), params in PyTorch orientation. Returns (B, 1)."""
    B, d_in = x.shape
    w0, b0 = params["w0"], params["b0"]           # (H1, D_in), (H1,)
    w1, b1 = params["w1"], params["b1"]           # (H2, H1),  (H2,)
    w2, b2 = params["w2"], params["b2"]           # (1, H2),   (1,)
    h1_dim = w0.shape[0]
    h2_dim = w1.shape[0]

    # Balanced, lane-aligned batch tiles; >=2 grid steps so the "parallel" axis
    # can shard across v7x's two TensorCores. Tiles sized well under VMEM.
    n_tiles = max(2, pl.cdiv(B, block_b))
    tb = _round_up(pl.cdiv(B, n_tiles), 128)
    bp = n_tiles * tb
    grid = (n_tiles,)

    cd = acts_dtype

    # Feature-major x with a single transpose+pad pass (batch on the lane axis).
    x_fm = jnp.pad(x.T.astype(cd), ((0, 0), (0, bp - B)))
    # Only score.sum() is used downstream: ship a (1, bp) lane-dense slab instead
    # of the full (S, B) matrix (S x less DMA, no transposed score copy).
    ssum = jnp.pad(jnp.sum(scores, axis=1, dtype=jnp.float32)[None, :],
                   ((0, 0), (0, bp - B)))

    # One-time host-side derived parameters (no per-step XLU transposes in-kernel).
    w0_c = w0.astype(cd)
    w1_c = w1.astype(cd)
    b0_col = b0.reshape(h1_dim, 1).astype(cd)
    b1_col = b1.reshape(h2_dim, 1).astype(cd)
    w1t = w1.T.astype(cd)                                      # (H1, H2)
    w2_col = w2.reshape(h2_dim, 1).astype(cd)                  # (H2, 1)
    w0_rowsum = jnp.sum(w0, axis=1, keepdims=True).astype(cd)  # (H1, 1)
    c_s = jnp.reshape(params["c"], (1, 1)).astype(jnp.float32)
    b2_s = jnp.reshape(b2, (1, 1)).astype(jnp.float32)

    def const(shape):
        return pl.BlockSpec(shape, lambda i: (0, 0))

    out = pl.pallas_call(
        ncv_ode_kernel,
        out_shape=jax.ShapeDtypeStruct((1, bp), jnp.float32),
        grid=grid,
        in_specs=[
            pl.BlockSpec((d_in, tb), lambda i: (0, i)),   # x (feature-major)
            pl.BlockSpec((1, tb), lambda i: (0, i)),      # score_sum (lane-dense)
            const((h1_dim, d_in)),                        # W0
            const((h1_dim, 1)),                           # b0
            const((h2_dim, h1_dim)),                      # W1
            const((h2_dim, 1)),                           # b1
            const((h1_dim, h2_dim)),                      # W1^T
            const((h2_dim, 1)),                           # W2^T
            const((h1_dim, 1)),                           # rowsum(W0)
            pl.BlockSpec(memory_space=pltpu.MemorySpace.SMEM),   # c
            pl.BlockSpec(memory_space=pltpu.MemorySpace.SMEM),   # b2
        ],
        out_specs=pl.BlockSpec((1, tb), lambda i: (0, i)),
        compiler_params=pltpu.CompilerParams(
            dimension_semantics=("parallel",),            # megacore sharding on v7x
            vmem_limit_bytes=48 * 1024 * 1024,
        ),
    )(x_fm, ssum, w0_c, b0_col, w1_c, b1_col, w1t, w2_col, w0_rowsum, c_s, b2_s)

    return out[0, :B].reshape(B, 1)


def make_params(key, d_in, h_dims):
    """PyTorch-orientation params: w_i (out, in), b_i (out,); dims = [D_in, *h_dims, 1]."""
    dims = [d_in] + list(h_dims) + [1]
    n_layers = len(dims) - 1
    ks = jax.random.split(key, 2 * n_layers)
    params = {}
    for i in range(n_layers):
        fan_in, fan_out = dims[i], dims[i + 1]
        bound = 1.0 / jnp.sqrt(jnp.float32(fan_in))
        params[f"w{i}"] = jax.random.uniform(
            ks[2 * i], (fan_out, fan_in), jnp.float32, minval=-1.0, maxval=1.0) * bound
        params[f"b{i}"] = jax.random.uniform(
            ks[2 * i + 1], (fan_out,), jnp.float32, minval=-1.0, maxval=1.0) * bound
    params["c"] = jnp.float32(0.5)   # init_val (trainable scalar c)
    return params


def reference_forward(x, scores, p):
    """Pure-JAX reference of the PyTorch semantics (for verification)."""
    def single(xb, sb):
        def net(xv):
            h0 = jax.nn.sigmoid(p["w0"] @ xv + p["b0"])
            h1 = jax.nn.sigmoid(p["w1"] @ h0 + p["b1"])
            return (p["w2"] @ h1 + p["b2"])[0]
        y, gx = jax.value_and_grad(net)(xb)
        return p["c"] + jnp.sum(gx) + y * jnp.sum(sb)
    return jax.vmap(single)(x, scores)[:, None]


if __name__ == "__main__":
    B, D_in, S = 2, 4, 8
    h_dims = [32, 32]

    key = jax.random.PRNGKey(0)
    kx, ks, kp = jax.random.split(key, 3)
    x = jax.random.normal(kx, (B, D_in), dtype=jnp.float32)
    scores = jax.random.normal(ks, (B, S), dtype=jnp.float32)
    params = make_params(kp, D_in, h_dims)

    y_pred = ncv_ode_forward(x, scores, params)
    jax.block_until_ready(y_pred)

    y_ref = reference_forward(x, scores, params)
    assert y_pred.shape == (B, 1)
    # tanh-form sigmoid matches the exp-form reference to within f32 rounding.
    assert jnp.allclose(y_pred, y_ref, atol=1e-4, rtol=1e-4), (y_pred, y_ref)

    print("KERNEL_OK")
</pallas_src>

<mosaic_0001>
module attributes {stable_mosaic.version = 11 : i64} {
  func.func @ncv_ode_kernel(%arg0: i32, %arg1: memref<4x128xf32, #tpu.memory_space<vmem>>, %arg2: memref<1x128xf32, #tpu.memory_space<vmem>>, %arg3: memref<32x4xf32, #tpu.memory_space<vmem>>, %arg4: memref<32x1xf32, #tpu.memory_space<vmem>>, %arg5: memref<32x32xf32, #tpu.memory_space<vmem>>, %arg6: memref<32x1xf32, #tpu.memory_space<vmem>>, %arg7: memref<32x32xf32, #tpu.memory_space<vmem>>, %arg8: memref<32x1xf32, #tpu.memory_space<vmem>>, %arg9: memref<32x1xf32, #tpu.memory_space<vmem>>, %arg10: memref<1x1xf32, #tpu.memory_space<smem>>, %arg11: memref<1x1xf32, #tpu.memory_space<smem>>, %arg12: memref<1x128xf32, #tpu.memory_space<vmem>>) attributes {dimension_semantics = [#tpu.dimension_semantics<parallel>], iteration_bounds = array<i64: 2>, scalar_prefetch = 0 : i64, scratch_operands = 0 : i64, tpu.core_type = #tpu.core_type<tc>, window_params = [{transform_indices = @transform_0, window_bounds = array<i64: 4, 128>}, {transform_indices = @transform_1, window_bounds = array<i64: 1, 128>}, {pipeline_mode = #tpu.pipeline_mode<synchronous>, transform_indices = @transform_2, window_bounds = array<i64: 32, 4>}, {pipeline_mode = #tpu.pipeline_mode<synchronous>, transform_indices = @transform_3, window_bounds = array<i64: 32, 1>}, {pipeline_mode = #tpu.pipeline_mode<synchronous>, transform_indices = @transform_4, window_bounds = array<i64: 32, 32>}, {pipeline_mode = #tpu.pipeline_mode<synchronous>, transform_indices = @transform_5, window_bounds = array<i64: 32, 1>}, {pipeline_mode = #tpu.pipeline_mode<synchronous>, transform_indices = @transform_6, window_bounds = array<i64: 32, 32>}, {pipeline_mode = #tpu.pipeline_mode<synchronous>, transform_indices = @transform_7, window_bounds = array<i64: 32, 1>}, {pipeline_mode = #tpu.pipeline_mode<synchronous>, transform_indices = @transform_8, window_bounds = array<i64: 32, 1>}, {transform_indices = @transform_9, window_bounds = array<i64: 1, 1>}, {transform_indices = @transform_10, window_bounds = array<i64: 1, 1>}, {transform_indices = @transform_11, window_bounds = array<i64: 1, 128>}]} {
    %c0 = arith.constant 0 : index
    %c0_0 = arith.constant 0 : index
    %0 = vector.load %arg1[%c0, %c0_0] : memref<4x128xf32, #tpu.memory_space<vmem>>, vector<4x128xf32>
    %c0_1 = arith.constant 0 : index
    %c0_2 = arith.constant 0 : index
    %1 = vector.load %arg2[%c0_1, %c0_2] : memref<1x128xf32, #tpu.memory_space<vmem>>, vector<1x128xf32>
    %c0_3 = arith.constant 0 : index
    %c0_4 = arith.constant 0 : index
    %2 = vector.load %arg3[%c0_3, %c0_4] : memref<32x4xf32, #tpu.memory_space<vmem>>, vector<32x4xf32>
    %c0_5 = arith.constant 0 : index
    %c0_6 = arith.constant 0 : index
    %3 = vector.load %arg4[%c0_5, %c0_6] : memref<32x1xf32, #tpu.memory_space<vmem>>, vector<32x1xf32>
    %c0_7 = arith.constant 0 : index
    %c0_8 = arith.constant 0 : index
    %4 = vector.load %arg5[%c0_7, %c0_8] : memref<32x32xf32, #tpu.memory_space<vmem>>, vector<32x32xf32>
    %c0_9 = arith.constant 0 : index
    %c0_10 = arith.constant 0 : index
    %5 = vector.load %arg6[%c0_9, %c0_10] : memref<32x1xf32, #tpu.memory_space<vmem>>, vector<32x1xf32>
    %c0_11 = arith.constant 0 : index
    %c0_12 = arith.constant 0 : index
    %6 = vector.load %arg7[%c0_11, %c0_12] : memref<32x32xf32, #tpu.memory_space<vmem>>, vector<32x32xf32>
    %c0_13 = arith.constant 0 : index
    %c0_14 = arith.constant 0 : index
    %7 = vector.load %arg8[%c0_13, %c0_14] : memref<32x1xf32, #tpu.memory_space<vmem>>, vector<32x1xf32>
    %c0_15 = arith.constant 0 : index
    %c0_16 = arith.constant 0 : index
    %8 = vector.load %arg9[%c0_15, %c0_16] : memref<32x1xf32, #tpu.memory_space<vmem>>, vector<32x1xf32>
    %c0_17 = arith.constant 0 : index
    %c0_18 = arith.constant 0 : index
    %9 = memref.load %arg10[%c0_17, %c0_18] : memref<1x1xf32, #tpu.memory_space<smem>>
    %c0_19 = arith.constant 0 : index
    %c0_20 = arith.constant 0 : index
    %10 = memref.load %arg11[%c0_19, %c0_20] : memref<1x1xf32, #tpu.memory_space<smem>>
    %cst = arith.constant dense<0.000000e+00> : vector<32x128xf32>
    %11 = tpu.matmul %2, %0, %cst {dimension_numbers = #tpu.dot_dimension_numbers<[1], [0], [0], [1], [0, 0, 1, 1], [], []>} : vector<32x4xf32>, vector<4x128xf32>, vector<32x128xf32> -> vector<32x128xf32>
    %12 = vector.broadcast %3 : vector<32x1xf32> to vector<32x128xf32>
    %13 = arith.addf %11, %12 : vector<32x128xf32>
    %cst_21 = arith.constant 5.000000e-01 : f32
    %14 = vector.broadcast %cst_21 : f32 to vector<32x128xf32>
    %15 = arith.mulf %14, %13 : vector<32x128xf32>
    %16 = math.tanh %15 : vector<32x128xf32>
    %cst_22 = arith.constant 1.000000e+00 : f32
    %17 = vector.broadcast %cst_22 : f32 to vector<32x128xf32>
    %18 = arith.addf %16, %17 : vector<32x128xf32>
    %cst_23 = arith.constant 5.000000e-01 : f32
    %19 = vector.broadcast %cst_23 : f32 to vector<32x128xf32>
    %20 = arith.mulf %19, %18 : vector<32x128xf32>
    %cst_24 = arith.constant dense<0.000000e+00> : vector<32x128xf32>
    %21 = tpu.matmul %4, %20, %cst_24 {dimension_numbers = #tpu.dot_dimension_numbers<[1], [0], [0], [1], [0, 0, 1, 1], [], []>} : vector<32x32xf32>, vector<32x128xf32>, vector<32x128xf32> -> vector<32x128xf32>
    %22 = vector.broadcast %5 : vector<32x1xf32> to vector<32x128xf32>
    %23 = arith.addf %21, %22 : vector<32x128xf32>
    %cst_25 = arith.constant 5.000000e-01 : f32
    %24 = vector.broadcast %cst_25 : f32 to vector<32x128xf32>
    %25 = arith.mulf %24, %23 : vector<32x128xf32>
    %26 = math.tanh %25 : vector<32x128xf32>
    %cst_26 = arith.constant 1.000000e+00 : f32
    %27 = vector.broadcast %cst_26 : f32 to vector<32x128xf32>
    %28 = arith.addf %26, %27 : vector<32x128xf32>
    %cst_27 = arith.constant 5.000000e-01 : f32
    %29 = vector.broadcast %cst_27 : f32 to vector<32x128xf32>
    %30 = arith.mulf %29, %28 : vector<32x128xf32>
    %31 = vector.broadcast %7 : vector<32x1xf32> to vector<32x128xf32>
    %32 = arith.mulf %31, %30 : vector<32x128xf32>
    %cst_28 = arith.constant dense<0.000000e+00> : vector<128xf32>
    %33 = vector.multi_reduction <add>, %32, %cst_28 [0] : vector<32x128xf32> to vector<128xf32>
    %34 = vector.shape_cast %33 : vector<128xf32> to vector<1x128xf32>
    %35 = vector.broadcast %10 : f32 to vector<1x128xf32>
    %36 = arith.addf %34, %35 : vector<1x128xf32>
    %cst_29 = arith.constant 1.000000e+00 : f32
    %37 = vector.broadcast %cst_29 : f32 to vector<32x128xf32>
    %38 = arith.subf %37, %30 : vector<32x128xf32>
    %39 = arith.mulf %32, %38 : vector<32x128xf32>
    %cst_30 = arith.constant dense<0.000000e+00> : vector<32x128xf32>
    %40 = tpu.matmul %6, %39, %cst_30 {dimension_numbers = #tpu.dot_dimension_numbers<[1], [0], [0], [1], [0, 0, 1, 1], [], []>} : vector<32x32xf32>, vector<32x128xf32>, vector<32x128xf32> -> vector<32x128xf32>
    %cst_31 = arith.constant 1.000000e+00 : f32
    %41 = vector.broadcast %cst_31 : f32 to vector<32x128xf32>
    %42 = arith.subf %41, %20 : vector<32x128xf32>
    %43 = arith.mulf %20, %42 : vector<32x128xf32>
    %44 = arith.mulf %40, %43 : vector<32x128xf32>
    %45 = vector.broadcast %8 : vector<32x1xf32> to vector<32x128xf32>
    %46 = arith.mulf %45, %44 : vector<32x128xf32>
    %cst_32 = arith.constant dense<0.000000e+00> : vector<128xf32>
    %47 = vector.multi_reduction <add>, %46, %cst_32 [0] : vector<32x128xf32> to vector<128xf32>
    %48 = vector.shape_cast %47 : vector<128xf32> to vector<1x128xf32>
    %49 = vector.broadcast %9 : f32 to vector<1x128xf32>
    %50 = arith.addf %49, %48 : vector<1x128xf32>
    %51 = arith.mulf %36, %1 : vector<1x128xf32>
    %52 = arith.addf %50, %51 : vector<1x128xf32>
    %c0_33 = arith.constant 0 : index
    %c0_34 = arith.constant 0 : index
    %53 = vector.load %arg12[%c0_33, %c0_34] : memref<1x128xf32, #tpu.memory_space<vmem>>, vector<1x128xf32>
    tpu.vector_store %arg12[%c0_33, %c0_34], %52 {strides = array<i32>} : memref<1x128xf32, #tpu.memory_space<vmem>>, vector<1x128xf32>,
    return
  }
  func.func @transform_0(%arg0: i32) -> (i32, i32) {
    %c0_i32 = arith.constant 0 : i32
    %c0_i32_0 = arith.constant 0 : i32
    return %c0_i32, %arg0 : i32, i32
  }
  func.func @transform_1(%arg0: i32) -> (i32, i32) {
    %c0_i32 = arith.constant 0 : i32
    %c0_i32_0 = arith.constant 0 : i32
    return %c0_i32, %arg0 : i32, i32
  }
  func.func @transform_2(%arg0: i32) -> (i32, i32) {
    %c0_i32 = arith.constant 0 : i32
    %c0_i32_0 = arith.constant 0 : i32
    %c0_i32_1 = arith.constant 0 : i32
    return %c0_i32, %c0_i32_0 : i32, i32
  }
  func.func @transform_3(%arg0: i32) -> (i32, i32) {
    %c0_i32 = arith.constant 0 : i32
    %c0_i32_0 = arith.constant 0 : i32
    %c0_i32_1 = arith.constant 0 : i32
    return %c0_i32, %c0_i32_0 : i32, i32
  }
  func.func @transform_4(%arg0: i32) -> (i32, i32) {
    %c0_i32 = arith.constant 0 : i32
    %c0_i32_0 = arith.constant 0 : i32
    %c0_i32_1 = arith.constant 0 : i32
    return %c0_i32, %c0_i32_0 : i32, i32
  }
  func.func @transform_5(%arg0: i32) -> (i32, i32) {
    %c0_i32 = arith.constant 0 : i32
    %c0_i32_0 = arith.constant 0 : i32
    %c0_i32_1 = arith.constant 0 : i32
    return %c0_i32, %c0_i32_0 : i32, i32
  }
  func.func @transform_6(%arg0: i32) -> (i32, i32) {
    %c0_i32 = arith.constant 0 : i32
    %c0_i32_0 = arith.constant 0 : i32
    %c0_i32_1 = arith.constant 0 : i32
    return %c0_i32, %c0_i32_0 : i32, i32
  }
  func.func @transform_7(%arg0: i32) -> (i32, i32) {
    %c0_i32 = arith.constant 0 : i32
    %c0_i32_0 = arith.constant 0 : i32
    %c0_i32_1 = arith.constant 0 : i32
    return %c0_i32, %c0_i32_0 : i32, i32
  }
  func.func @transform_8(%arg0: i32) -> (i32, i32) {
    %c0_i32 = arith.constant 0 : i32
    %c0_i32_0 = arith.constant 0 : i32
    %c0_i32_1 = arith.constant 0 : i32
    return %c0_i32, %c0_i32_0 : i32, i32
  }
  func.func @transform_9(%arg0: i32) -> (i32, i32) {
    %c0_i32 = arith.constant 0 : i32
    %c0_i32_0 = arith.constant 0 : i32
    %c0_i32_1 = arith.constant 0 : i32
    return %c0_i32, %c0_i32_0 : i32, i32
  }
  func.func @transform_10(%arg0: i32) -> (i32, i32) {
    %c0_i32 = arith.constant 0 : i32
    %c0_i32_0 = arith.constant 0 : i32
    %c0_i32_1 = arith.constant 0 : i32
    return %c0_i32, %c0_i32_0 : i32, i32
  }
  func.func @transform_11(%arg0: i32) -> (i32, i32) {
    %c0_i32 = arith.constant 0 : i32
    %c0_i32_0 = arith.constant 0 : i32
    return %c0_i32, %arg0 : i32, i32
  }
}

</mosaic_0001>

<llo_original>
// kernel: tpu_custom_call.1
$region0: #{tpu_custom_call.1}
  #allocation0 [shape = 'u32[]', space=smem, size = 0x4, offset = 0x4, fixed_abs, tag = 'smem constant byte address 0x4 - core index']
  #allocation1 [shape = 'u32[144,128]{1,0:T(1,128)}', space=vmem, size = 0x12000, scoped, tag = 'internal scratch']
  #allocation2 [shape = 'f32[1,1]{1,0:T(1,128)S(6)}', space=smem, size = 0x200, scoped, tag = 'scoped memory for tpu_custom_call.1']
  #allocation3 [shape = 'f32[1,1]{1,0:T(1,128)S(6)}', space=smem, size = 0x200, scoped, tag = 'scoped memory for tpu_custom_call.1']
  %s0 = inlined_call_operand.vmem [shape: f32[4,256], index: 0, kind: input, shape index: {}]
  %s1 = inlined_call_operand.vmem [shape: f32[1,256], index: 1, kind: input, shape index: {}]
  %s2 = inlined_call_operand.vmem [shape: f32[32,4], index: 2, kind: input, shape index: {}]
  %s3 = inlined_call_operand.vmem [shape: f32[32,1], index: 3, kind: input, shape index: {}]
  %s4 = inlined_call_operand.vmem [shape: f32[32,32], index: 4, kind: input, shape index: {}]
  %s5 = inlined_call_operand.vmem [shape: f32[32,1], index: 5, kind: input, shape index: {}]
  %s6 = inlined_call_operand.vmem [shape: f32[32,32], index: 6, kind: input, shape index: {}]
  %s7 = inlined_call_operand.vmem [shape: f32[32,1], index: 7, kind: input, shape index: {}]
  %s8 = inlined_call_operand.vmem [shape: f32[32,1], index: 8, kind: input, shape index: {}]
  %s9 = inlined_call_operand.<no memory space> [shape: f32[1,1], index: 9, kind: input, shape index: {}]
  %s10 = inlined_call_operand.<no memory space> [shape: f32[1,1], index: 10, kind: input, shape index: {}]
  %s11 = inlined_call_operand.hbm [shape: f32[1,256], index: 11, kind: output, shape index: {}]
  %s12 = sld [smem:[#allocation0]]
  $region77: #{tpu_custom_call.1} parent=0
    _
  %s14 = ssub.s32 1, %s12
  %s15 = scalar_select 0, %s14, %s12
  %16 = sst [smem:[#allocation2]] %s9
  %17 = sst [smem:[#allocation3]] %s10
  $region1: #{tpu_custom_call.1} parent=0
    #allocation4 [shape = 'u8[1024]{0}', space=vmem, size = 0x400, scoped, tag = 'output window, operand 0']
    #allocation5 [shape = 's32[2]{0}', space=sflag, size = 0x8, scoped, tag = 'scoped memory for tpu_custom_call.1']
    %18 = vsyncpa [#allocation5], 0
    %s19 = scalar_lea.sflag [#allocation5], 1
    %20 = vsyncpa %s19, 0
    loop: start=0, step=1, limit=4
    $region2: #{tpu_custom_call.1} parent=1 // loop_pre_header
      _
    $region3: #{tpu_custom_call.1} parent=1 // loop_header
      %s22 = sphi 0, %s26
      %p23 = scmp.ge.s32.totalorder %s22, 4
      %s32 = sphi 0, %s34
      %s35 = sphi 0, %s32
      %s36 = sphi 0, %s35
      %s52 = sphi 0, %s36
      %s58 = sphi 0, %s60
      %s61 = sphi 0, %s58
      %s62 = sphi 0, %s61
      %s78 = sphi 0, %s62
      %s82 = sphi 0, %s82
      %s84 = sphi 0, %s82
      %s85 = sphi 0, %s84
      %s99 = sphi 0, %s85
      %s103 = sphi 0, %s103
      %s105 = sphi 0, %s103
      %s106 = sphi 0, %s105
      %s120 = sphi 0, %s106
      %s124 = sphi 0, %s124
      %s126 = sphi 0, %s124
      %s127 = sphi 0, %s126
      %s141 = sphi 0, %s127
      %s145 = sphi 0, %s145
      %s147 = sphi 0, %s145
      %s148 = sphi 0, %s147
      %s162 = sphi 0, %s148
      %s166 = sphi 0, %s166
      %s168 = sphi 0, %s166
      %s169 = sphi 0, %s168
      %s183 = sphi 0, %s169
      %s187 = sphi 0, %s187
      %s189 = sphi 0, %s187
      %s190 = sphi 0, %s189
      %s204 = sphi 0, %s190
      %s208 = sphi 0, %s208
      %s210 = sphi 0, %s208
      %s211 = sphi 0, %s210
      %s225 = sphi 0, %s211
      %s229 = sphi 0, %s229
      %s231 = sphi 0, %s229
      %s232 = sphi 0, %s231
      %s246 = sphi 0, %s232
      %s250 = sphi 0, %s250
      %s252 = sphi 0, %s250
      %s253 = sphi 0, %s252
      %s267 = sphi 0, %s253
      %s273 = sphi 0, %s275
      %s276 = sphi 0, %s273
      %s277 = sphi 0, %s276
      %s293 = sphi 0, %s277
    $region4: #{tpu_custom_call.1} parent=1 // loop_header_branch
      %25 = sbr.rel (%p23) target = $region8
    $region5: #{tpu_custom_call.1} parent=1 // loop_body
      %s27 = ssub.s32 %s22, 1
      %s28 = ssub.s32 %s22, 2
      %s29 = sadd.s32 %s22, 1
      %s30 = ssub.s32 %s22, %s29
      %p31 = scmp.eq.s32.totalorder %s30, 0
      %s33 = sadd.s32 %s32, 1
      %s34 = scalar_select %p31, %s32, %s33
      %p37 = pneg %p31
      %p38 = scmp.eq.s32.totalorder %s22, 1
      %p39 = por %p37, %p38
      %p40 = scmp.ne.s32.totalorder %s32, %s35
      %p41 = scmp.eq.s32.totalorder %s22, 0
      %p42 = por %p40, %p41
      %p43 = scmp.ne.s32.totalorder %s32, %s35
      %p44 = scmp.eq.s32.totalorder %s27, 1
      %p45 = por %p43, %p44
      %p46 = scmp.ne.s32.totalorder %s35, %s36
      %p47 = scmp.eq.s32.totalorder %s27, 0
      %p48 = por %p46, %p47
      %p49 = scmp.ne.s32.totalorder %s35, %s36
      %p50 = scmp.eq.s32.totalorder %s28, 1
      %p51 = por %p49, %p50
      %p53 = scmp.ne.s32.totalorder %s36, %s52
      %p54 = scmp.eq.s32.totalorder %s28, 0
      %p55 = por %p53, %p54
      %s56 = ssub.s32 %s22, %s29
      %p57 = scmp.eq.s32.totalorder %s56, 0
      %s59 = sadd.s32 %s58, 1
      %s60 = scalar_select %p57, %s58, %s59
      %p63 = pneg %p57
      %p64 = scmp.eq.s32.totalorder %s22, 1
      %p65 = por %p63, %p64
      %p66 = scmp.ne.s32.totalorder %s58, %s61
      %p67 = scmp.eq.s32.totalorder %s22, 0
      %p68 = por %p66, %p67
      %p69 = scmp.ne.s32.totalorder %s58, %s61
      %p70 = scmp.eq.s32.totalorder %s27, 1
      %p71 = por %p69, %p70
      %p72 = scmp.ne.s32.totalorder %s61, %s62
      %p73 = scmp.eq.s32.totalorder %s27, 0
      %p74 = por %p72, %p73
      %p75 = scmp.ne.s32.totalorder %s61, %s62
      %p76 = scmp.eq.s32.totalorder %s28, 1
      %p77 = por %p75, %p76
      %p79 = scmp.ne.s32.totalorder %s62, %s78
      %p80 = scmp.eq.s32.totalorder %s28, 0
      %p81 = por %p79, %p80
      %s83 = sadd.s32 %s82, 1
      %p86 = scmp.eq.s32.totalorder %s22, 1
      %p87 = scmp.ne.s32.totalorder %s82, %s84
      %p88 = scmp.eq.s32.totalorder %s22, 0
      %p89 = por %p87, %p88
      %p90 = scmp.ne.s32.totalorder %s82, %s84
      %p91 = scmp.eq.s32.totalorder %s27, 1
      %p92 = por %p90, %p91
      %p93 = scmp.ne.s32.totalorder %s84, %s85
      %p94 = scmp.eq.s32.totalorder %s27, 0
      %p95 = por %p93, %p94
      %p96 = scmp.ne.s32.totalorder %s84, %s85
      %p97 = scmp.eq.s32.totalorder %s28, 1
      %p98 = por %p96, %p97
      %p100 = scmp.ne.s32.totalorder %s85, %s99
      %p101 = scmp.eq.s32.totalorder %s28, 0
      %p102 = por %p100, %p101
      %s104 = sadd.s32 %s103, 1
      %p107 = scmp.eq.s32.totalorder %s22, 1
      %p108 = scmp.ne.s32.totalorder %s103, %s105
      %p109 = scmp.eq.s32.totalorder %s22, 0
      %p110 = por %p108, %p109
      %p111 = scmp.ne.s32.totalorder %s103, %s105
      %p112 = scmp.eq.s32.totalorder %s27, 1
      %p113 = por %p111, %p112
      %p114 = scmp.ne.s32.totalorder %s105, %s106
      %p115 = scmp.eq.s32.totalorder %s27, 0
      %p116 = por %p114, %p115
      %p117 = scmp.ne.s32.totalorder %s105, %s106
      %p118 = scmp.eq.s32.totalorder %s28, 1
      %p119 = por %p117, %p118
      %p121 = scmp.ne.s32.totalorder %s106, %s120
      %p122 = scmp.eq.s32.totalorder %s28, 0
      %p123 = por %p121, %p122
      %s125 = sadd.s32 %s124, 1
      %p128 = scmp.eq.s32.totalorder %s22, 1
      %p129 = scmp.ne.s32.totalorder %s124, %s126
      %p130 = scmp.eq.s32.totalorder %s22, 0
      %p131 = por %p129, %p130
      %p132 = scmp.ne.s32.totalorder %s124, %s126
      %p133 = scmp.eq.s32.totalorder %s27, 1
      %p134 = por %p132, %p133
      %p135 = scmp.ne.s32.totalorder %s126, %s127
      %p136 = scmp.eq.s32.totalorder %s27, 0
      %p137 = por %p135, %p136
      %p138 = scmp.ne.s32.totalorder %s126, %s127
      %p139 = scmp.eq.s32.totalorder %s28, 1
      %p140 = por %p138, %p139
      %p142 = scmp.ne.s32.totalorder %s127, %s141
      %p143 = scmp.eq.s32.totalorder %s28, 0
      %p144 = por %p142, %p143
      %s146 = sadd.s32 %s145, 1
      %p149 = scmp.eq.s32.totalorder %s22, 1
      %p150 = scmp.ne.s32.totalorder %s145, %s147
      %p151 = scmp.eq.s32.totalorder %s22, 0
      %p152 = por %p150, %p151
      %p153 = scmp.ne.s32.totalorder %s145, %s147
      %p154 = scmp.eq.s32.totalorder %s27, 1
      %p155 = por %p153, %p154
      %p156 = scmp.ne.s32.totalorder %s147, %s148
      %p157 = scmp.eq.s32.totalorder %s27, 0
      %p158 = por %p156, %p157
      %p159 = scmp.ne.s32.totalorder %s147, %s148
      %p160 = scmp.eq.s32.totalorder %s28, 1
      %p161 = por %p159, %p160
      %p163 = scmp.ne.s32.totalorder %s148, %s162
      %p164 = scmp.eq.s32.totalorder %s28, 0
      %p165 = por %p163, %p164
      %s167 = sadd.s32 %s166, 1
      %p170 = scmp.eq.s32.totalorder %s22, 1
      %p171 = scmp.ne.s32.totalorder %s166, %s168
      %p172 = scmp.eq.s32.totalorder %s22, 0
      %p173 = por %p171, %p172
      %p174 = scmp.ne.s32.totalorder %s166, %s168
      %p175 = scmp.eq.s32.totalorder %s27, 1
      %p176 = por %p174, %p175
      %p177 = scmp.ne.s32.totalorder %s168, %s169
      %p178 = scmp.eq.s32.totalorder %s27, 0
      %p179 = por %p177, %p178
      %p180 = scmp.ne.s32.totalorder %s168, %s169
      %p181 = scmp.eq.s32.totalorder %s28, 1
      %p182 = por %p180, %p181
      %p184 = scmp.ne.s32.totalorder %s169, %s183
      %p185 = scmp.eq.s32.totalorder %s28, 0
      %p186 = por %p184, %p185
      %s188 = sadd.s32 %s187, 1
      %p191 = scmp.eq.s32.totalorder %s22, 1
      %p192 = scmp.ne.s32.totalorder %s187, %s189
      %p193 = scmp.eq.s32.totalorder %s22, 0
      %p194 = por %p192, %p193
      %p195 = scmp.ne.s32.totalorder %s187, %s189
      %p196 = scmp.eq.s32.totalorder %s27, 1
      %p197 = por %p195, %p196
      %p198 = scmp.ne.s32.totalorder %s189, %s190
      %p199 = scmp.eq.s32.totalorder %s27, 0
      %p200 = por %p198, %p199
      %p201 = scmp.ne.s32.totalorder %s189, %s190
      %p202 = scmp.eq.s32.totalorder %s28, 1
      %p203 = por %p201, %p202
      %p205 = scmp.ne.s32.totalorder %s190, %s204
      %p206 = scmp.eq.s32.totalorder %s28, 0
      %p207 = por %p205, %p206
      %s209 = sadd.s32 %s208, 1
      %p212 = scmp.eq.s32.totalorder %s22, 1
      %p213 = scmp.ne.s32.totalorder %s208, %s210
      %p214 = scmp.eq.s32.totalorder %s22, 0
      %p215 = por %p213, %p214
      %p216 = scmp.ne.s32.totalorder %s208, %s210
      %p217 = scmp.eq.s32.totalorder %s27, 1
      %p218 = por %p216, %p217
      %p219 = scmp.ne.s32.totalorder %s210, %s211
      %p220 = scmp.eq.s32.totalorder %s27, 0
      %p221 = por %p219, %p220
      %p222 = scmp.ne.s32.totalorder %s210, %s211
      %p223 = scmp.eq.s32.totalorder %s28, 1
      %p224 = por %p222, %p223
      %p226 = scmp.ne.s32.totalorder %s211, %s225
      %p227 = scmp.eq.s32.totalorder %s28, 0
      %p228 = por %p226, %p227
      %s230 = sadd.s32 %s229, 1
      %p233 = scmp.eq.s32.totalorder %s22, 1
      %p234 = scmp.ne.s32.totalorder %s229, %s231
      %p235 = scmp.eq.s32.totalorder %s22, 0
      %p236 = por %p234, %p235
      %p237 = scmp.ne.s32.totalorder %s229, %s231
      %p238 = scmp.eq.s32.totalorder %s27, 1
      %p239 = por %p237, %p238
      %p240 = scmp.ne.s32.totalorder %s231, %s232
      %p241 = scmp.eq.s32.totalorder %s27, 0
      %p242 = por %p240, %p241
      %p243 = scmp.ne.s32.totalorder %s231, %s232
      %p244 = scmp.eq.s32.totalorder %s28, 1
      %p245 = por %p243, %p244
      %p247 = scmp.ne.s32.totalorder %s232, %s246
      %p248 = scmp.eq.s32.totalorder %s28, 0
      %p249 = por %p247, %p248
      %s251 = sadd.s32 %s250, 1
      %p254 = scmp.eq.s32.totalorder %s22, 1
      %p255 = scmp.ne.s32.totalorder %s250, %s252
      %p256 = scmp.eq.s32.totalorder %s22, 0
      %p257 = por %p255, %p256
      %p258 = scmp.ne.s32.totalorder %s250, %s252
      %p259 = scmp.eq.s32.totalorder %s27, 1
      %p260 = por %p258, %p259
      %p261 = scmp.ne.s32.totalorder %s252, %s253
      %p262 = scmp.eq.s32.totalorder %s27, 0
      %p263 = por %p261, %p262
      %p264 = scmp.ne.s32.totalorder %s252, %s253
      %p265 = scmp.eq.s32.totalorder %s28, 1
      %p266 = por %p264, %p265
      %p268 = scmp.ne.s32.totalorder %s253, %s267
      %p269 = scmp.eq.s32.totalorder %s28, 0
      %p270 = por %p268, %p269
      %s271 = ssub.s32 %s22, %s29
      %p272 = scmp.eq.s32.totalorder %s271, 0
      %s274 = sadd.s32 %s273, 1
      %s275 = scalar_select %p272, %s273, %s274
      %p278 = pneg %p272
      %p279 = scmp.eq.s32.totalorder %s22, 1
      %p280 = por %p278, %p279
      %p281 = scmp.ne.s32.totalorder %s273, %s276
      %p282 = scmp.eq.s32.totalorder %s22, 0
      %p283 = por %p281, %p282
      %p284 = scmp.ne.s32.totalorder %s273, %s276
      %p285 = scmp.eq.s32.totalorder %s27, 1
      %p286 = por %p284, %p285
      %p287 = scmp.ne.s32.totalorder %s276, %s277
      %p288 = scmp.eq.s32.totalorder %s27, 0
      %p289 = por %p287, %p288
      %p290 = scmp.ne.s32.totalorder %s276, %s277
      %p291 = scmp.eq.s32.totalorder %s28, 1
      %p292 = por %p290, %p291
      %p294 = scmp.ne.s32.totalorder %s277, %s293
      %p295 = scmp.eq.s32.totalorder %s28, 0
      %p296 = por %p294, %p295
      %p297 = scmp.le.s32.totalorder 1, %s22
      %p298 = scmp.lt.s32.totalorder %s22, 3
      %p299 = pnand %p297, %p298
      %p300 = pneg %p299
      // Predicated region
      $region9: #{tpu_custom_call.1} parent=5 // pred_check
        _
      $region10: #{tpu_custom_call.1} parent=5 // pred_check_branch
        %302 = sbr.rel (%p299) target = $region12
      $region11: #{tpu_custom_call.1} parent=5 // pred_region
        %s303 = ssub.s32 %s22, 1
        // Predicated region
        $region13: #{tpu_custom_call.1} parent=11 // pred_check
          %p304 = pneg %p95
        $region14: #{tpu_custom_call.1} parent=11 // pred_check_branch
          %306 = sbr.rel (%p304) target = $region16
        $region15: #{tpu_custom_call.1} parent=11 // pred_region
          _
        $region16: #{tpu_custom_call.1} parent=11 // pred_fallthru
          _
        // Predicated region
        $region17: #{tpu_custom_call.1} parent=11 // pred_check
          %p307 = pneg %p116
        $region18: #{tpu_custom_call.1} parent=11 // pred_check_branch
          %309 = sbr.rel (%p307) target = $region20
        $region19: #{tpu_custom_call.1} parent=11 // pred_region
          _
        $region20: #{tpu_custom_call.1} parent=11 // pred_fallthru
          _
        // Predicated region
        $region21: #{tpu_custom_call.1} parent=11 // pred_check
          %p310 = pneg %p137
        $region22: #{tpu_custom_call.1} parent=11 // pred_check_branch
          %312 = sbr.rel (%p310) target = $region24
        $region23: #{tpu_custom_call.1} parent=11 // pred_region
          _
        $region24: #{tpu_custom_call.1} parent=11 // pred_fallthru
          _
        // Predicated region
        $region25: #{tpu_custom_call.1} parent=11 // pred_check
          %p313 = pneg %p158
        $region26: #{tpu_custom_call.1} parent=11 // pred_check_branch
          %315 = sbr.rel (%p313) target = $region28
        $region27: #{tpu_custom_call.1} parent=11 // pred_region
          _
        $region28: #{tpu_custom_call.1} parent=11 // pred_fallthru
          _
        // Predicated region
        $region29: #{tpu_custom_call.1} parent=11 // pred_check
          %p316 = pneg %p179
        $region30: #{tpu_custom_call.1} parent=11 // pred_check_branch
          %318 = sbr.rel (%p316) target = $region32
        $region31: #{tpu_custom_call.1} parent=11 // pred_region
          _
        $region32: #{tpu_custom_call.1} parent=11 // pred_fallthru
          _
        // Predicated region
        $region33: #{tpu_custom_call.1} parent=11 // pred_check
          %p319 = pneg %p200
        $region34: #{tpu_custom_call.1} parent=11 // pred_check_branch
          %321 = sbr.rel (%p319) target = $region36
        $region35: #{tpu_custom_call.1} parent=11 // pred_region
          _
        $region36: #{tpu_custom_call.1} parent=11 // pred_fallthru
          _
        // Predicated region
        $region37: #{tpu_custom_call.1} parent=11 // pred_check
          %p322 = pneg %p221
        $region38: #{tpu_custom_call.1} parent=11 // pred_check_branch
          %324 = sbr.rel (%p322) target = $region40
        $region39: #{tpu_custom_call.1} parent=11 // pred_region
          _
        $region40: #{tpu_custom_call.1} parent=11 // pred_fallthru
          _
        // Predicated region
        $region41: #{tpu_custom_call.1} parent=11 // pred_check
          %p325 = pneg %p242
        $region42: #{tpu_custom_call.1} parent=11 // pred_check_branch
          %327 = sbr.rel (%p325) target = $region44
        $region43: #{tpu_custom_call.1} parent=11 // pred_region
          _
        $region44: #{tpu_custom_call.1} parent=11 // pred_fallthru
          _
        // Predicated region
        $region45: #{tpu_custom_call.1} parent=11 // pred_check
          %p328 = pneg %p263
        $region46: #{tpu_custom_call.1} parent=11 // pred_check_branch
          %330 = sbr.rel (%p328) target = $region48
        $region47: #{tpu_custom_call.1} parent=11 // pred_region
          _
        $region48: #{tpu_custom_call.1} parent=11 // pred_fallthru
          _
      $region12: #{tpu_custom_call.1} parent=5 // pred_fallthru
        _
      %p331 = scmp.lt.s32.totalorder %s22, 2
      // Predicated region
      $region49: #{tpu_custom_call.1} parent=5 // pred_check
        %p332 = pneg %p331
      $region50: #{tpu_custom_call.1} parent=5 // pred_check_branch
        %334 = sbr.rel (%p332) target = $region52
      $region51: #{tpu_custom_call.1} parent=5 // pred_region
        // Predicated region
        $region53: #{tpu_custom_call.1} parent=51 // pred_check
          %p335 = pneg %p42
        $region54: #{tpu_custom_call.1} parent=51 // pred_check_branch
          %337 = sbr.rel (%p335) target = $region56
        $region55: #{tpu_custom_call.1} parent=51 // pred_region
          %p338 = scmp.lt.s32.totalorder %s22, 1
          %s339 = scalar_select %p338, %s22, 1
          %s340 = smul.addr %s339, 4
          %s341 = scalar_lea.vmem %s0, %s340
        $region56: #{tpu_custom_call.1} parent=51 // pred_fallthru
          _
        // Predicated region
        $region57: #{tpu_custom_call.1} parent=51 // pred_check
          %p342 = pneg %p68
        $region58: #{tpu_custom_call.1} parent=51 // pred_check_branch
          %344 = sbr.rel (%p342) target = $region60
        $region59: #{tpu_custom_call.1} parent=51 // pred_region
          %p345 = scmp.lt.s32.totalorder %s22, 1
          %s346 = scalar_select %p345, %s22, 1
          %s347 = scalar_lea.vmem %s1, %s346
        $region60: #{tpu_custom_call.1} parent=51 // pred_fallthru
          _
      $region52: #{tpu_custom_call.1} parent=5 // pred_fallthru
        _
      %p348 = scmp.le.s32.totalorder 1, %s22
      %p349 = scmp.lt.s32.totalorder %s22, 3
      %p350 = pnand %p348, %p349
      %p351 = pneg %p350
      // Predicated region
      $region61: #{tpu_custom_call.1} parent=5 // pred_check
        _
      $region62: #{tpu_custom_call.1} parent=5 // pred_check_branch
        %353 = sbr.rel (%p350) target = $region64
      $region63: #{tpu_custom_call.1} parent=5 // pred_region
        %s354 = ssub.s32 %s22, 1
        %p355 = scmp.lt.s32.totalorder %s27, 1
        %s356 = scalar_select %p355, %s27, 1
        %s357 = smul.addr %s356, 4
        %s358 = scalar_lea.vmem %s0, %s357
        %p359 = pneg %p48
        %p360 = pneg %p45
        %p361 = scmp.lt.s32.totalorder %s27, 1
        %s362 = scalar_select %p361, %s27, 1
        %s363 = scalar_lea.vmem %s1, %s362
        %p364 = pneg %p74
        %p365 = pneg %p71
        %p366 = pneg %p95
        %p367 = pneg %p92
        %p368 = pneg %p116
        %p369 = pneg %p113
        %p370 = pneg %p137
        %p371 = pneg %p134
        %p372 = pneg %p158
        %p373 = pneg %p155
        %p374 = pneg %p179
        %p375 = pneg %p176
        %p376 = pneg %p200
        %p377 = pneg %p197
        %p378 = pneg %p221
        %p379 = pneg %p218
        %p380 = pneg %p242
        %p381 = pneg %p239
        %p382 = pneg %p263
        %p383 = pneg %p260
        %p384 = pneg %p289
        %p385 = pneg %p286
        %s386 = sand.u32 %s276, 1
        %s387 = scalar_lea.sflag [#allocation5], %s386
        %s388 = sand.u32 %s276, 1
        %s389 = scalar_lea.vmem [#allocation4], %s388
        %p390 = scmp.lt.s32.totalorder %s27, 1
        %s391 = scalar_select %p390, %s27, 1
        %s392 = smul.addr %s391, 4
        %s393 = scalar_lea.vmem %s0, %s392
        %p394 = scmp.lt.s32.totalorder %s27, 1
        %s395 = scalar_select %p394, %s27, 1
        %s396 = scalar_lea.vmem %s1, %s395
        %v397 = vld [vmem:[%s393] sm:$0xf]
        %v398 = vld [vmem:[%s396] sm:$0x1]
        %v399 = vld [vmem:[%s2] sm:$0xff]
        %v400 = vld [vmem:[%s2 + $0x8] sm:$0xff]
        %v401 = vld [vmem:[%s2 + $0x10] sm:$0xff]
        %v402 = vld [vmem:[%s2 + $0x18] sm:$0xff]
        %v403 = vld [vmem:[%s3] sm:$0xff]
        %v404 = vld [vmem:[%s3 + $0x8] sm:$0xff]
        %v405 = vld [vmem:[%s3 + $0x10] sm:$0xff]
        %v406 = vld [vmem:[%s3 + $0x18] sm:$0xff]
        %v407 = vld [vmem:[%s4] sm:$0xff]
        %v408 = vld [vmem:[%s4 + $0x8] sm:$0xff]
        %v409 = vld [vmem:[%s4 + $0x10] sm:$0xff]
        %v410 = vld [vmem:[%s4 + $0x18] sm:$0xff]
        %v411 = vld [vmem:[%s5] sm:$0xff]
        %v412 = vld [vmem:[%s5 + $0x8] sm:$0xff]
        %v413 = vld [vmem:[%s5 + $0x10] sm:$0xff]
        %v414 = vld [vmem:[%s5 + $0x18] sm:$0xff]
        %v415 = vld [vmem:[%s6] sm:$0xff]
        %v416 = vld [vmem:[%s6 + $0x8] sm:$0xff]
        %v417 = vld [vmem:[%s6 + $0x10] sm:$0xff]
        %v418 = vld [vmem:[%s6 + $0x18] sm:$0xff]
        %v419 = vld [vmem:[%s7] sm:$0xff]
        %v420 = vld [vmem:[%s7 + $0x8] sm:$0xff]
        %v421 = vld [vmem:[%s7 + $0x10] sm:$0xff]
        %v422 = vld [vmem:[%s7 + $0x18] sm:$0xff]
        %v423 = vld [vmem:[%s8] sm:$0xff]
        %v424 = vld [vmem:[%s8 + $0x8] sm:$0xff]
        %v425 = vld [vmem:[%s8 + $0x10] sm:$0xff]
        %v426 = vld [vmem:[%s8 + $0x18] sm:$0xff]
        %s427 = sld [smem:[#allocation2]]
        %s428 = sld [smem:[#allocation3]]
        %430 = vset.pattern.permute.xlu0 0
        %431 = vperm.xlu0 %430, %v403
        %v432 = vpop.permute.xlu0 %431
        %435 = vset.pattern.permute.xlu0 0
        %436 = vperm.xlu0 %435, %v404
        %v437 = vpop.permute.xlu0 %436
        %440 = vset.pattern.permute.xlu0 0
        %441 = vperm.xlu0 %440, %v405
        %v442 = vpop.permute.xlu0 %441
        %445 = vset.pattern.permute.xlu0 0
        %446 = vperm.xlu0 %445, %v406
        %v447 = vpop.permute.xlu0 %446
        %vm449 = vcmask 31744
        %v451 = vsel %vm449, %v399, 0
        %v454 = vsel %vm449, %v400, 0
        %v457 = vsel %vm449, %v401, 0
        %v460 = vsel %vm449, %v402, 0
        %vm462 = vcmask 1043456
        %v464 = vsel %vm462, %v397, 0
        %466 = vmatprep.subr.mxu0 0.0
        %467 = vmatpush1.msra.mxu0 0.0
        %468 = vmatprep.subr.mxu0 0.0
        %469 = vmatpush1.msra.mxu0 0.0
        %470 = vmatprep.subr.mxu0 0.0
        %471 = vmatpush1.msra.mxu0 0.0
        %472 = vmatprep.subr.mxu0 0.0
        %473 = vmatpush1.msra.mxu0 0.0
        %474 = vmatprep.subr.mxu0 0.0
        %475 = vmatpush1.msra.mxu0 0.0
        %476 = vmatprep.subr.mxu0 0.0
        %477 = vmatpush1.msra.mxu0 0.0
        %478 = vmatprep.subr.mxu0 0.0
        %479 = vmatpush1.msra.mxu0 0.0
        %480 = vmatprep.subr.mxu0 0.0
        %481 = vmatpush1.msra.mxu0 0.0
        %482 = vmatprep.subr.mxu0 0.0
        %483 = vmatpush1.msra.mxu0 0.0
        %484 = vmatprep.subr.mxu0 0.0
        %485 = vmatpush1.msra.mxu0 0.0
        %486 = vmatprep.subr.mxu0 0.0
        %487 = vmatpush1.msra.mxu0 0.0
        %488 = vmatprep.subr.mxu0 0.0
        %489 = vmatpush1.msra.mxu0 0.0
        %490 = vmatprep.subr.mxu0 0.0
        %491 = vmatpush1.msra.mxu0 0.0
        %492 = vmatprep.subr.mxu0 0.0
        %493 = vmatpush1.msra.mxu0 0.0
        %494 = vmatprep.subr.mxu0 0.0
        %495 = vmatpush1.msra.mxu0 0.0
        %496 = vmatprep.subr.mxu0 0.0
        %497 = vmatpush1.msra.mxu0 %v464
        %498 = vmatprep.subr.mxu0 0.0
        %499 = vmatpush2.msra.mxu0 0.0
        %500 = vmatprep.subr.mxu0 0.0
        %501 = vmatpush2.msra.mxu0 0.0
        %502 = vmatprep.subr.mxu0 0.0
        %503 = vmatpush2.msra.mxu0 0.0
        %504 = vmatprep.subr.mxu0 0.0
        %505 = vmatpush2.msra.mxu0 0.0
        %506 = vmatprep.subr.mxu0 0.0
        %507 = vmatpush2.msra.mxu0 0.0
        %508 = vmatprep.subr.mxu0 0.0
        %509 = vmatpush2.msra.mxu0 0.0
        %510 = vmatprep.subr.mxu0 0.0
        %511 = vmatpush2.msra.mxu0 0.0
        %512 = vmatprep.subr.mxu0 0.0
        %513 = vmatpush2.msra.mxu0 0.0
        %514 = vmatprep.subr.mxu0 0.0
        %515 = vmatpush2.msra.mxu0 0.0
        %516 = vmatprep.subr.mxu0 0.0
        %517 = vmatpush2.msra.mxu0 0.0
        %518 = vmatprep.subr.mxu0 0.0
        %519 = vmatpush2.msra.mxu0 0.0
        %520 = vmatprep.subr.mxu0 0.0
        %521 = vmatpush2.msra.mxu0 0.0
        %522 = vmatprep.subr.mxu0 0.0
        %523 = vmatpush2.msra.mxu0 0.0
        %524 = vmatprep.subr.mxu0 0.0
        %525 = vmatpush2.msra.mxu0 0.0
        %526 = vmatprep.subr.mxu0 0.0
        %527 = vmatpush2.msra.mxu0 0.0
        %528 = vmatprep.subr.mxu0 0.0
        %529 = vmatpush2.msra.mxu0 0.0
        %530 = vmatprep.mubr.f32.mxu0 0.0
        %531 = vmatmul.mubr.f32.gmra.mxu0 %v451
        %v532 = vpop.f32.mrf.mxu0
        %v533 = vadd.f32 %v432, %v532
        %v534 = vpop.f32.mrf.mxu0
        %535 = vmatprep.mubr.f32.mxu0 0.0
        %536 = vmatmul.mubr.f32.gmra.mxu0 %v454
        %v537 = vpop.f32.mrf.mxu0
        %v538 = vadd.f32 %v437, %v537
        %v539 = vpop.f32.mrf.mxu0
        %540 = vmatprep.mubr.f32.mxu0 0.0
        %541 = vmatmul.mubr.f32.gmra.mxu0 %v457
        %v542 = vpop.f32.mrf.mxu0
        %v543 = vadd.f32 %v442, %v542
        %v544 = vpop.f32.mrf.mxu0
        %545 = vmatprep.mubr.f32.mxu0 0.0
        %546 = vmatmul.mubr.f32.gmra.mxu0 %v460
        %v547 = vpop.f32.mrf.mxu0
        %v548 = vadd.f32 %v447, %v547
        %v549 = vpop.f32.mrf.mxu0
        %550 = vdwg.mxu0
        %v551 = vmul.f32 %v533, 0.5
        %v552 = vmul.f32 %v538, 0.5
        %v553 = vmul.f32 %v543, 0.5
        %v554 = vmul.f32 %v548, 0.5
        %v555 = vtanh.pop %v551
        %v556 = vtanh.pop %v552
        %v557 = vtanh.pop %v553
        %v558 = vtanh.pop %v554
        %v559 = vadd.f32 %v555, 1.0
        %v560 = vadd.f32 %v556, 1.0
        %v561 = vadd.f32 %v557, 1.0
        %v562 = vadd.f32 %v558, 1.0
        %v563 = vmul.f32 %v559, 0.5
        %v564 = vmul.f32 %v560, 0.5
        %v565 = vmul.f32 %v561, 0.5
        %v566 = vmul.f32 %v562, 0.5
        %568 = vset.pattern.permute.xlu0 0
        %569 = vperm.xlu0 %568, %v411
        %v570 = vpop.permute.xlu0 %569
        %573 = vset.pattern.permute.xlu0 0
        %574 = vperm.xlu0 %573, %v412
        %v575 = vpop.permute.xlu0 %574
        %578 = vset.pattern.permute.xlu0 0
        %579 = vperm.xlu0 %578, %v413
        %v580 = vpop.permute.xlu0 %579
        %583 = vset.pattern.permute.xlu0 0
        %584 = vperm.xlu0 %583, %v414
        %v585 = vpop.permute.xlu0 %584
        %vm587 = vcmask 261120
        %v589 = vsel %vm587, %v407, 0
        %v592 = vsel %vm587, %v408, 0
        %v595 = vsel %vm587, %v409, 0
        %v598 = vsel %vm587, %v410, 0
        %600 = vmatprep.subr.mxu0 0.0
        %601 = vmatpush1.msra.mxu0 0.0
        %602 = vmatprep.subr.mxu0 0.0
        %603 = vmatpush1.msra.mxu0 0.0
        %604 = vmatprep.subr.mxu0 0.0
        %605 = vmatpush1.msra.mxu0 0.0
        %606 = vmatprep.subr.mxu0 0.0
        %607 = vmatpush1.msra.mxu0 0.0
        %608 = vmatprep.subr.mxu0 0.0
        %609 = vmatpush1.msra.mxu0 0.0
        %610 = vmatprep.subr.mxu0 0.0
        %611 = vmatpush1.msra.mxu0 0.0
        %612 = vmatprep.subr.mxu0 0.0
        %613 = vmatpush1.msra.mxu0 0.0
        %614 = vmatprep.subr.mxu0 0.0
        %615 = vmatpush1.msra.mxu0 0.0
        %616 = vmatprep.subr.mxu0 0.0
        %617 = vmatpush1.msra.mxu0 0.0
        %618 = vmatprep.subr.mxu0 0.0
        %619 = vmatpush1.msra.mxu0 0.0
        %620 = vmatprep.subr.mxu0 0.0
        %621 = vmatpush1.msra.mxu0 0.0
        %622 = vmatprep.subr.mxu0 0.0
        %623 = vmatpush1.msra.mxu0 0.0
        %624 = vmatprep.subr.mxu0 0.0
        %625 = vmatpush1.msra.mxu0 %v566
        %626 = vmatprep.subr.mxu0 0.0
        %627 = vmatpush1.msra.mxu0 %v565
        %628 = vmatprep.subr.mxu0 0.0
        %629 = vmatpush1.msra.mxu0 %v564
        %630 = vmatprep.subr.mxu0 0.0
        %631 = vmatpush1.msra.mxu0 %v563
        %632 = vmatprep.subr.mxu0 0.0
        %633 = vmatpush2.msra.mxu0 0.0
        %634 = vmatprep.subr.mxu0 0.0
        %635 = vmatpush2.msra.mxu0 0.0
        %636 = vmatprep.subr.mxu0 0.0
        %637 = vmatpush2.msra.mxu0 0.0
        %638 = vmatprep.subr.mxu0 0.0
        %639 = vmatpush2.msra.mxu0 0.0
        %640 = vmatprep.subr.mxu0 0.0
        %641 = vmatpush2.msra.mxu0 0.0
        %642 = vmatprep.subr.mxu0 0.0
        %643 = vmatpush2.msra.mxu0 0.0
        %644 = vmatprep.subr.mxu0 0.0
        %645 = vmatpush2.msra.mxu0 0.0
        %646 = vmatprep.subr.mxu0 0.0
        %647 = vmatpush2.msra.mxu0 0.0
        %648 = vmatprep.subr.mxu0 0.0
        %649 = vmatpush2.msra.mxu0 0.0
        %650 = vmatprep.subr.mxu0 0.0
        %651 = vmatpush2.msra.mxu0 0.0
        %652 = vmatprep.subr.mxu0 0.0
        %653 = vmatpush2.msra.mxu0 0.0
        %654 = vmatprep.subr.mxu0 0.0
        %655 = vmatpush2.msra.mxu0 0.0
        %656 = vmatprep.subr.mxu0 0.0
        %657 = vmatpush2.msra.mxu0 0.0
        %658 = vmatprep.subr.mxu0 0.0
        %659 = vmatpush2.msra.mxu0 0.0
        %660 = vmatprep.subr.mxu0 0.0
        %661 = vmatpush2.msra.mxu0 0.0
        %662 = vmatprep.subr.mxu0 0.0
        %663 = vmatpush2.msra.mxu0 0.0
        %664 = vmatprep.mubr.f32.mxu0 0.0
        %665 = vmatmul.mubr.f32.gmra.mxu0 %v589
        %v666 = vpop.f32.mrf.mxu0
        %v667 = vadd.f32 %v570, %v666
        %v668 = vpop.f32.mrf.mxu0
        %669 = vmatprep.mubr.f32.mxu0 0.0
        %670 = vmatmul.mubr.f32.gmra.mxu0 %v592
        %v671 = vpop.f32.mrf.mxu0
        %v672 = vadd.f32 %v575, %v671
        %v673 = vpop.f32.mrf.mxu0
        %674 = vmatprep.mubr.f32.mxu0 0.0
        %675 = vmatmul.mubr.f32.gmra.mxu0 %v595
        %v676 = vpop.f32.mrf.mxu0
        %v677 = vadd.f32 %v580, %v676
        %v678 = vpop.f32.mrf.mxu0
        %679 = vmatprep.mubr.f32.mxu0 0.0
        %680 = vmatmul.mubr.f32.gmra.mxu0 %v598
        %v681 = vpop.f32.mrf.mxu0
        %v682 = vadd.f32 %v585, %v681
        %v683 = vpop.f32.mrf.mxu0
        %684 = vdwg.mxu0
        %v685 = vmul.f32 %v667, 0.5
        %v686 = vmul.f32 %v672, 0.5
        %v687 = vmul.f32 %v677, 0.5
        %v688 = vmul.f32 %v682, 0.5
        %v689 = vtanh.pop %v685
        %v690 = vtanh.pop %v686
        %v691 = vtanh.pop %v687
        %v692 = vtanh.pop %v688
        %v693 = vadd.f32 %v689, 1.0
        %v694 = vadd.f32 %v690, 1.0
        %v695 = vadd.f32 %v691, 1.0
        %v696 = vadd.f32 %v692, 1.0
        %v697 = vmul.f32 %v693, 0.5
        %v698 = vmul.f32 %v694, 0.5
        %v699 = vmul.f32 %v695, 0.5
        %v700 = vmul.f32 %v696, 0.5
        %702 = vset.pattern.permute.xlu0 0
        %703 = vperm.xlu0 %702, %v419
        %v704 = vpop.permute.xlu0 %703
        %707 = vset.pattern.permute.xlu0 0
        %708 = vperm.xlu0 %707, %v420
        %v709 = vpop.permute.xlu0 %708
        %712 = vset.pattern.permute.xlu0 0
        %713 = vperm.xlu0 %712, %v421
        %v714 = vpop.permute.xlu0 %713
        %717 = vset.pattern.permute.xlu0 0
        %718 = vperm.xlu0 %717, %v422
        %v719 = vpop.permute.xlu0 %718
        %v721 = vmul.f32 %v704, %v697
        %v722 = vmul.f32 %v709, %v698
        %v723 = vmul.f32 %v714, %v699
        %v724 = vmul.f32 %v719, %v700
        %v725 = vadd.f32 %v721, %v722
        %v726 = vadd.f32 %v725, %v723
        %v727 = vadd.f32 %v726, %v724
        %v728 = vrot.slane %v727, 4
        %v729 = vadd.f32 %v727, %v728
        %v730 = vrot.slane %v729, 2
        %v731 = vadd.f32 %v729, %v730
        %v732 = vrot.slane %v731, 1
        %v733 = vadd.f32 %v731, %v732
        %v734 = vstv %s428
        %v735 = vadd.f32 %v733, %v734
        %v736 = vsub.f32 1.0, %v697
        %v737 = vsub.f32 1.0, %v698
        %v738 = vsub.f32 1.0, %v699
        %v739 = vsub.f32 1.0, %v700
        %v740 = vmul.f32 %v721, %v736
        %v741 = vmul.f32 %v722, %v737
        %v742 = vmul.f32 %v723, %v738
        %v743 = vmul.f32 %v724, %v739
        %v745 = vsel %vm587, %v415, 0
        %v748 = vsel %vm587, %v416, 0
        %v751 = vsel %vm587, %v417, 0
        %v754 = vsel %vm587, %v418, 0
        %756 = vmatprep.subr.mxu0 0.0
        %757 = vmatpush1.msra.mxu0 0.0
        %758 = vmatprep.subr.mxu0 0.0
        %759 = vmatpush1.msra.mxu0 0.0
        %760 = vmatprep.subr.mxu0 0.0
        %761 = vmatpush1.msra.mxu0 0.0
        %762 = vmatprep.subr.mxu0 0.0
        %763 = vmatpush1.msra.mxu0 0.0
        %764 = vmatprep.subr.mxu0 0.0
        %765 = vmatpush1.msra.mxu0 0.0
        %766 = vmatprep.subr.mxu0 0.0
        %767 = vmatpush1.msra.mxu0 0.0
        %768 = vmatprep.subr.mxu0 0.0
        %769 = vmatpush1.msra.mxu0 0.0
        %770 = vmatprep.subr.mxu0 0.0
        %771 = vmatpush1.msra.mxu0 0.0
        %772 = vmatprep.subr.mxu0 0.0
        %773 = vmatpush1.msra.mxu0 0.0
        %774 = vmatprep.subr.mxu0 0.0
        %775 = vmatpush1.msra.mxu0 0.0
        %776 = vmatprep.subr.mxu0 0.0
        %777 = vmatpush1.msra.mxu0 0.0
        %778 = vmatprep.subr.mxu0 0.0
        %779 = vmatpush1.msra.mxu0 0.0
        %780 = vmatprep.subr.mxu0 0.0
        %781 = vmatpush1.msra.mxu0 %v743
        %782 = vmatprep.subr.mxu0 0.0
        %783 = vmatpush1.msra.mxu0 %v742
        %784 = vmatprep.subr.mxu0 0.0
        %785 = vmatpush1.msra.mxu0 %v741
        %786 = vmatprep.subr.mxu0 0.0
        %787 = vmatpush1.msra.mxu0 %v740
        %788 = vmatprep.subr.mxu0 0.0
        %789 = vmatpush2.msra.mxu0 0.0
        %790 = vmatprep.subr.mxu0 0.0
        %791 = vmatpush2.msra.mxu0 0.0
        %792 = vmatprep.subr.mxu0 0.0
        %793 = vmatpush2.msra.mxu0 0.0
        %794 = vmatprep.subr.mxu0 0.0
        %795 = vmatpush2.msra.mxu0 0.0
        %796 = vmatprep.subr.mxu0 0.0
        %797 = vmatpush2.msra.mxu0 0.0
        %798 = vmatprep.subr.mxu0 0.0
        %799 = vmatpush2.msra.mxu0 0.0
        %800 = vmatprep.subr.mxu0 0.0
        %801 = vmatpush2.msra.mxu0 0.0
        %802 = vmatprep.subr.mxu0 0.0
        %803 = vmatpush2.msra.mxu0 0.0
        %804 = vmatprep.subr.mxu0 0.0
        %805 = vmatpush2.msra.mxu0 0.0
        %806 = vmatprep.subr.mxu0 0.0
        %807 = vmatpush2.msra.mxu0 0.0
        %808 = vmatprep.subr.mxu0 0.0
        %809 = vmatpush2.msra.mxu0 0.0
        %810 = vmatprep.subr.mxu0 0.0
        %811 = vmatpush2.msra.mxu0 0.0
        %812 = vmatprep.subr.mxu0 0.0
        %813 = vmatpush2.msra.mxu0 0.0
        %814 = vmatprep.subr.mxu0 0.0
        %815 = vmatpush2.msra.mxu0 0.0
        %816 = vmatprep.subr.mxu0 0.0
        %817 = vmatpush2.msra.mxu0 0.0
        %818 = vmatprep.subr.mxu0 0.0
        %819 = vmatpush2.msra.mxu0 0.0
        %820 = vmatprep.mubr.f32.mxu0 0.0
        %821 = vmatmul.mubr.f32.gmra.mxu0 %v745
        %v822 = vpop.f32.mrf.mxu0
        %v823 = vadd.f32 0.0, %v822
        %v824 = vpop.f32.mrf.mxu0
        %825 = vmatprep.mubr.f32.mxu0 0.0
        %826 = vmatmul.mubr.f32.gmra.mxu0 %v748
        %v827 = vpop.f32.mrf.mxu0
        %v828 = vadd.f32 0.0, %v827
        %v829 = vpop.f32.mrf.mxu0
        %830 = vmatprep.mubr.f32.mxu0 0.0
        %831 = vmatmul.mubr.f32.gmra.mxu0 %v751
        %v832 = vpop.f32.mrf.mxu0
        %v833 = vadd.f32 0.0, %v832
        %v834 = vpop.f32.mrf.mxu0
        %835 = vmatprep.mubr.f32.mxu0 0.0
        %836 = vmatmul.mubr.f32.gmra.mxu0 %v754
        %v837 = vpop.f32.mrf.mxu0
        %v838 = vadd.f32 0.0, %v837
        %v839 = vpop.f32.mrf.mxu0
        %840 = vdwg.mxu0
        %v841 = vsub.f32 1.0, %v563
        %v842 = vsub.f32 1.0, %v564
        %v843 = vsub.f32 1.0, %v565
        %v844 = vsub.f32 1.0, %v566
        %v845 = vmul.f32 %v563, %v841
        %v846 = vmul.f32 %v564, %v842
        %v847 = vmul.f32 %v565, %v843
        %v848 = vmul.f32 %v566, %v844
        %v849 = vmul.f32 %v823, %v845
        %v850 = vmul.f32 %v828, %v846
        %v851 = vmul.f32 %v833, %v847
        %v852 = vmul.f32 %v838, %v848
        %854 = vset.pattern.permute.xlu0 0
        %855 = vperm.xlu0 %854, %v423
        %v856 = vpop.permute.xlu0 %855
        %859 = vset.pattern.permute.xlu0 0
        %860 = vperm.xlu0 %859, %v424
        %v861 = vpop.permute.xlu0 %860
        %864 = vset.pattern.permute.xlu0 0
        %865 = vperm.xlu0 %864, %v425
        %v866 = vpop.permute.xlu0 %865
        %869 = vset.pattern.permute.xlu0 0
        %870 = vperm.xlu0 %869, %v426
        %v871 = vpop.permute.xlu0 %870
        %v873 = vmul.f32 %v856, %v849
        %v874 = vmul.f32 %v861, %v850
        %v875 = vmul.f32 %v866, %v851
        %v876 = vmul.f32 %v871, %v852
        %v877 = vadd.f32 %v873, %v874
        %v878 = vadd.f32 %v877, %v875
        %v879 = vadd.f32 %v878, %v876
        %v880 = vrot.slane %v879, 4
        %v881 = vadd.f32 %v879, %v880
        %v882 = vrot.slane %v881, 2
        %v883 = vadd.f32 %v881, %v882
        %v884 = vrot.slane %v883, 1
        %v885 = vadd.f32 %v883, %v884
        %v886 = vstv %s427
        %v887 = vadd.f32 %v886, %v885
        %v888 = vmul.f32 %v735, %v398
        %v889 = vadd.f32 %v887, %v888
        %890 = vst [vmem:[%s389] sm:$0x1] %v889
        %s891 = sand.u32 %s276, 1
        %s892 = scalar_lea.sflag [#allocation5], %s891
        %s893 = sand.u32 %s276, 1
        %s894 = scalar_lea.vmem [#allocation4], %s893
        // Predicated region
        $region65: #{tpu_custom_call.1} parent=63 // pred_check
          %p895 = pneg %p286
        $region66: #{tpu_custom_call.1} parent=63 // pred_check_branch
          %897 = sbr.rel (%p895) target = $region68
        $region67: #{tpu_custom_call.1} parent=63 // pred_region
          %s899 = ssub.s32 16, 16
          %900 = vsyncadd %s892, %s899
          %s901 = smul.addr %s27, 16
          %s902 = scalar_lea.hbm %s11, %s901
          %s904 = sshll.u32 %s894, 4
          %s905 = int_to_ptr.vmem [resolvable:$true] %s904
          %907 = dma.vmem_to_hbm [thread:$0]  %s905, 16, %s902, %s892
        $region68: #{tpu_custom_call.1} parent=63 // pred_fallthru
          _
      $region64: #{tpu_custom_call.1} parent=5 // pred_fallthru
        _
      %p908 = scmp.le.s32.totalorder 2, %s22
      // Predicated region
      $region69: #{tpu_custom_call.1} parent=5 // pred_check
        %p909 = pneg %p908
      $region70: #{tpu_custom_call.1} parent=5 // pred_check_branch
        %911 = sbr.rel (%p909) target = $region72
      $region71: #{tpu_custom_call.1} parent=5 // pred_region
        %s912 = ssub.s32 %s22, 2
        // Predicated region
        $region73: #{tpu_custom_call.1} parent=71 // pred_check
          %p913 = pneg %p292
        $region74: #{tpu_custom_call.1} parent=71 // pred_check_branch
          %915 = sbr.rel (%p913) target = $region76
        $region75: #{tpu_custom_call.1} parent=71 // pred_region
          %s916 = sand.u32 %s277, 1
          %s917 = scalar_lea.sflag [#allocation5], %s916
          %s918 = sand.u32 %s277, 1
          %s919 = scalar_lea.vmem [#allocation4], %s918
          %920 = dma.done %s917, 16
        $region76: #{tpu_custom_call.1} parent=71 // pred_fallthru
          _
      $region72: #{tpu_custom_call.1} parent=5 // pred_fallthru
        _
    $region6: #{tpu_custom_call.1} parent=1 // loop_footer
      %s26 = sadd.s32 1, %s22
    $region7: #{tpu_custom_call.1} parent=1 // loop_footer_branch
      %21 = sbr.rel target = $region3
    $region8: #{tpu_custom_call.1} parent=1 // loop_exit
      _
    %921 = vsyncpa [#allocation5], 1
    %s922 = scalar_lea.sflag [#allocation5], 1
    %923 = vsyncpa %s922, 1

</llo_original>
